<compile_context>
chip_gen: v6e
topology: v6e:2x2x1
jax: 0.10.0
libtpu: 0.0.40
codegen_flags: <defaults>
</compile_context>

<pallas_src>
import functools

import jax
import jax.numpy as jnp
from jax import lax
from jax.experimental import pallas as pl
from jax.experimental.pallas import tpu as pltpu


def _rnn_net_kernel(x_ref, w_ref, p_ref, out_ref, *, B, T, D, H):
    """Single-invocation kernel: RNN recurrence + O=1 output head.

    x_ref  : (B*T, D)   bf16  inputs, PyTorch row order (row = b*T + t)
    w_ref  : (H+D, H)   bf16  [W_hh^T rows 0:H | W_ih^T rows H:H+D]
    p_ref  : (3,   H)   f32   row0 = b_ih+b_hh, row1 = w_out, row2 = [b_out, 0..]
    out_ref: (B*T, 1)   f32   linear-head outputs, PyTorch row order
    """
    whh = w_ref[:H, :]                       # (H, H) bf16, tile-aligned slice
    wih = w_ref[H:H + D, :]                  # (D, H) bf16, tile-aligned slice
    b = p_ref[0:1, :]                        # (1, H) f32
    wout = p_ref[1:2, :]                     # (1, H) f32
    bout = p_ref[2:3, 0:1]                   # (1, 1) f32

    # ---- 1) Hoisted input projection for every timestep at once (MXU) -----
    xp = (jnp.dot(x_ref[...], wih, preferred_element_type=jnp.float32)
          + b).reshape(B, T, H)              # register-value reshape only

    # ---- 2) Sequential recurrence, fully unrolled; h stays in vregs -------
    h = jnp.zeros((B, H), jnp.float32)
    hs = []
    for t in range(T):                       # static unroll (T is small)
        h = jnp.tanh(
            xp[:, t, :]
            + jnp.dot(h.astype(jnp.bfloat16), whh,
                      preferred_element_type=jnp.float32))
        hs.append(h)                         # kept in registers, no VMEM store

    # ---- 3) O=1 head: VPU multiply + lane reduction, single dense store ---
    hs_all = jnp.stack(hs, axis=1).reshape(B * T, H)   # row = b*T + t
    y = jnp.sum(hs_all * wout, axis=-1, keepdims=True) + bout
    out_ref[...] = y.astype(out_ref.dtype)


def rnn_net_forward(x, w_ih, w_hh, b_ih, b_hh, w_out, b_out):
    """Pallas wrapper reproducing RNN_Net.forward.

    x      : (B, T, D)  float32   (batch_first=True)
    w_ih   : (H, D)     PyTorch layout (weight_ih_l0)
    w_hh   : (H, H)     PyTorch layout (weight_hh_l0)
    b_ih   : (H,)
    b_hh   : (H,)
    w_out  : (O, H)     PyTorch layout (linear.weight), O == 1
    b_out  : (O,)
    returns (B*T, O)    identical row order to PyTorch's view(-1, H) @ Linear
    """
    B, T, D = x.shape
    H = w_hh.shape[0]
    O = w_out.shape[0]
    assert O == 1, "kernel implements the module default output_dim=1"
    # TODO(synk): general O>1 head would use an MXU matmul with an (H, O) slab.

    # --- one-time parameter glue (plain JAX, outside the kernel) -----------
    x2 = jnp.asarray(x, jnp.float32).reshape(B * T, D).astype(jnp.bfloat16)
    whh_t = jnp.asarray(w_hh, jnp.float32).T.astype(jnp.bfloat16)   # (H, H)
    wih_t = jnp.asarray(w_ih, jnp.float32).T.astype(jnp.bfloat16)   # (D, H)
    w_slab = jnp.concatenate([whh_t, wih_t], axis=0)                # (H+D, H)

    b = (jnp.asarray(b_ih, jnp.float32)
         + jnp.asarray(b_hh, jnp.float32)).reshape(1, H)
    wout_row = jnp.asarray(w_out, jnp.float32).reshape(1, H)
    bout_row = jnp.concatenate(
        [jnp.asarray(b_out, jnp.float32).reshape(1, 1),
         jnp.zeros((1, H - 1), jnp.float32)], axis=1)
    p_slab = jnp.concatenate([b, wout_row, bout_row], axis=0)       # (3, H)

    vmem = pl.BlockSpec(memory_space=pltpu.MemorySpace.VMEM)
    return pl.pallas_call(
        functools.partial(_rnn_net_kernel, B=B, T=T, D=D, H=H),
        out_shape=jax.ShapeDtypeStruct((B * T, 1), jnp.float32),
        in_specs=[vmem, vmem, vmem],
        out_specs=vmem,
    )(x2, w_slab, p_slab)


def _reference_forward(x, w_ih, w_hh, b_ih, b_hh, w_out, b_out,
                       mxu_dtype=jnp.float32):
    """Pure-JAX reference (torch.nn.RNN + Linear). `mxu_dtype` lets us also
    build a bf16-matmul reference matching the kernel's MXU precision."""
    B, T, D = x.shape
    H = w_hh.shape[0]
    xc = jnp.asarray(x, jnp.float32).astype(mxu_dtype)
    wih = jnp.asarray(w_ih, jnp.float32).astype(mxu_dtype)
    whh = jnp.asarray(w_hh, jnp.float32).astype(mxu_dtype)

    def step(h, x_t):
        pre = (jnp.dot(x_t, wih.T, preferred_element_type=jnp.float32) + b_ih
               + jnp.dot(h.astype(mxu_dtype), whh.T,
                         preferred_element_type=jnp.float32) + b_hh)
        h_new = jnp.tanh(pre)
        return h_new, h_new

    h0 = jnp.zeros((B, H), jnp.float32)
    _, hs = lax.scan(step, h0, jnp.transpose(xc, (1, 0, 2)))    # (T, B, H)
    hs = jnp.transpose(hs, (1, 0, 2)).reshape(B * T, H)         # row = b*T + t
    return hs @ w_out.T + b_out


if __name__ == "__main__":
    # Small shapes consistent with the module: input_dim=8, hidden_dim=32,
    # batch=2, seq=8, output_dim=1, num_layers=1.
    B, T, D, H, O = 2, 8, 8, 32, 1

    key = jax.random.PRNGKey(0)
    kx, k1, k2, k3, k4, k5, k6 = jax.random.split(key, 7)

    scale = 1.0 / jnp.sqrt(jnp.float32(H))   # PyTorch-style uniform init bound
    x = jax.random.normal(kx, (B, T, D), jnp.float32)
    w_ih = jax.random.uniform(k1, (H, D), jnp.float32, -scale, scale)
    w_hh = jax.random.uniform(k2, (H, H), jnp.float32, -scale, scale)
    b_ih = jax.random.uniform(k3, (H,), jnp.float32, -scale, scale)
    b_hh = jax.random.uniform(k4, (H,), jnp.float32, -scale, scale)
    w_out = jax.random.uniform(k5, (O, H), jnp.float32, -scale, scale)
    b_out = jax.random.uniform(k6, (O,), jnp.float32, -scale, scale)

    out = rnn_net_forward(x, w_ih, w_hh, b_ih, b_hh, w_out, b_out)
    out = jax.block_until_ready(out)
    assert out.shape == (B * T, O), out.shape

    # Algorithm-match check (same bf16 MXU operands, f32 accumulation).
    ref_bf16 = _reference_forward(x, w_ih, w_hh, b_ih, b_hh, w_out, b_out,
                                  mxu_dtype=jnp.bfloat16)
    assert jnp.allclose(out, ref_bf16, atol=1e-2, rtol=1e-2), \
        "mismatch vs bf16-MXU reference"

    # Sanity check against true f32 math (tolerance loosened for bf16 MXU ops).
    ref_f32 = _reference_forward(x, w_ih, w_hh, b_ih, b_hh, w_out, b_out,
                                 mxu_dtype=jnp.float32)
    assert jnp.allclose(out, ref_f32, atol=6e-2, rtol=6e-2), \
        "mismatch vs f32 reference"

    print("KERNEL_OK")
</pallas_src>

<mosaic_0001>
module attributes {stable_mosaic.version = 11 : i64} {
  func.func @_rnn_net_kernel(%arg0: memref<16x8xbf16, #tpu.memory_space<vmem>>, %arg1: memref<40x32xbf16, #tpu.memory_space<vmem>>, %arg2: memref<3x32xf32, #tpu.memory_space<vmem>>, %arg3: memref<16x1xf32, #tpu.memory_space<vmem>>) attributes {dimension_semantics = [], scalar_prefetch = 0 : i64, scratch_operands = 0 : i64, tpu.core_type = #tpu.core_type<tc>} {
    %c0 = arith.constant 0 : index
    %c0_0 = arith.constant 0 : index
    %0 = vector.load %arg1[%c0, %c0_0] : memref<40x32xbf16, #tpu.memory_space<vmem>>, vector<32x32xbf16>
    %c32 = arith.constant 32 : index
    %c0_1 = arith.constant 0 : index
    %1 = vector.load %arg1[%c32, %c0_1] : memref<40x32xbf16, #tpu.memory_space<vmem>>, vector<8x32xbf16>
    %c0_2 = arith.constant 0 : index
    %c0_3 = arith.constant 0 : index
    %2 = vector.load %arg2[%c0_2, %c0_3] : memref<3x32xf32, #tpu.memory_space<vmem>>, vector<1x32xf32>
    %c1 = arith.constant 1 : index
    %c0_4 = arith.constant 0 : index
    %3 = vector.load %arg2[%c1, %c0_4] : memref<3x32xf32, #tpu.memory_space<vmem>>, vector<1x32xf32>
    %c2 = arith.constant 2 : index
    %c0_5 = arith.constant 0 : index
    %4 = vector.load %arg2[%c2, %c0_5] : memref<3x32xf32, #tpu.memory_space<vmem>>, vector<1x1xf32>
    %c0_6 = arith.constant 0 : index
    %c0_7 = arith.constant 0 : index
    %5 = vector.load %arg0[%c0_6, %c0_7] : memref<16x8xbf16, #tpu.memory_space<vmem>>, vector<16x8xbf16>
    %cst = arith.constant dense<0.000000e+00> : vector<16x32xf32>
    %6 = tpu.matmul %5, %1, %cst {dimension_numbers = #tpu.dot_dimension_numbers<[1], [0], [0], [1], [0, 0, 1, 1], [], []>} : vector<16x8xbf16>, vector<8x32xbf16>, vector<16x32xf32> -> vector<16x32xf32>
    %7 = vector.broadcast %2 : vector<1x32xf32> to vector<16x32xf32>
    %8 = arith.addf %6, %7 : vector<16x32xf32>
    %9 = vector.shape_cast %8 : vector<16x32xf32> to vector<2x8x32xf32>
    %cst_8 = arith.constant 0.000000e+00 : f32
    %10 = vector.broadcast %cst_8 : f32 to vector<2x32xf32>
    %11 = vector.extract_strided_slice %9 {offsets = [0, 0, 0], sizes = [2, 1, 32], strides = [1, 1, 1]} : vector<2x8x32xf32> to vector<2x1x32xf32>
    %12 = vector.shape_cast %11 : vector<2x1x32xf32> to vector<2x32xf32>
    %13 = arith.truncf %10 : vector<2x32xf32> to vector<2x32xbf16>
    %cst_9 = arith.constant dense<0.000000e+00> : vector<2x32xf32>
    %14 = tpu.matmul %13, %0, %cst_9 {dimension_numbers = #tpu.dot_dimension_numbers<[1], [0], [0], [1], [0, 0, 1, 1], [], []>} : vector<2x32xbf16>, vector<32x32xbf16>, vector<2x32xf32> -> vector<2x32xf32>
    %15 = arith.addf %12, %14 : vector<2x32xf32>
    %16 = math.tanh %15 : vector<2x32xf32>
    %17 = vector.extract_strided_slice %9 {offsets = [0, 1, 0], sizes = [2, 1, 32], strides = [1, 1, 1]} : vector<2x8x32xf32> to vector<2x1x32xf32>
    %18 = vector.shape_cast %17 : vector<2x1x32xf32> to vector<2x32xf32>
    %19 = arith.truncf %16 : vector<2x32xf32> to vector<2x32xbf16>
    %cst_10 = arith.constant dense<0.000000e+00> : vector<2x32xf32>
    %20 = tpu.matmul %19, %0, %cst_10 {dimension_numbers = #tpu.dot_dimension_numbers<[1], [0], [0], [1], [0, 0, 1, 1], [], []>} : vector<2x32xbf16>, vector<32x32xbf16>, vector<2x32xf32> -> vector<2x32xf32>
    %21 = arith.addf %18, %20 : vector<2x32xf32>
    %22 = math.tanh %21 : vector<2x32xf32>
    %23 = vector.extract_strided_slice %9 {offsets = [0, 2, 0], sizes = [2, 1, 32], strides = [1, 1, 1]} : vector<2x8x32xf32> to vector<2x1x32xf32>
    %24 = vector.shape_cast %23 : vector<2x1x32xf32> to vector<2x32xf32>
    %25 = arith.truncf %22 : vector<2x32xf32> to vector<2x32xbf16>
    %cst_11 = arith.constant dense<0.000000e+00> : vector<2x32xf32>
    %26 = tpu.matmul %25, %0, %cst_11 {dimension_numbers = #tpu.dot_dimension_numbers<[1], [0], [0], [1], [0, 0, 1, 1], [], []>} : vector<2x32xbf16>, vector<32x32xbf16>, vector<2x32xf32> -> vector<2x32xf32>
    %27 = arith.addf %24, %26 : vector<2x32xf32>
    %28 = math.tanh %27 : vector<2x32xf32>
    %29 = vector.extract_strided_slice %9 {offsets = [0, 3, 0], sizes = [2, 1, 32], strides = [1, 1, 1]} : vector<2x8x32xf32> to vector<2x1x32xf32>
    %30 = vector.shape_cast %29 : vector<2x1x32xf32> to vector<2x32xf32>
    %31 = arith.truncf %28 : vector<2x32xf32> to vector<2x32xbf16>
    %cst_12 = arith.constant dense<0.000000e+00> : vector<2x32xf32>
    %32 = tpu.matmul %31, %0, %cst_12 {dimension_numbers = #tpu.dot_dimension_numbers<[1], [0], [0], [1], [0, 0, 1, 1], [], []>} : vector<2x32xbf16>, vector<32x32xbf16>, vector<2x32xf32> -> vector<2x32xf32>
    %33 = arith.addf %30, %32 : vector<2x32xf32>
    %34 = math.tanh %33 : vector<2x32xf32>
    %35 = vector.extract_strided_slice %9 {offsets = [0, 4, 0], sizes = [2, 1, 32], strides = [1, 1, 1]} : vector<2x8x32xf32> to vector<2x1x32xf32>
    %36 = vector.shape_cast %35 : vector<2x1x32xf32> to vector<2x32xf32>
    %37 = arith.truncf %34 : vector<2x32xf32> to vector<2x32xbf16>
    %cst_13 = arith.constant dense<0.000000e+00> : vector<2x32xf32>
    %38 = tpu.matmul %37, %0, %cst_13 {dimension_numbers = #tpu.dot_dimension_numbers<[1], [0], [0], [1], [0, 0, 1, 1], [], []>} : vector<2x32xbf16>, vector<32x32xbf16>, vector<2x32xf32> -> vector<2x32xf32>
    %39 = arith.addf %36, %38 : vector<2x32xf32>
    %40 = math.tanh %39 : vector<2x32xf32>
    %41 = vector.extract_strided_slice %9 {offsets = [0, 5, 0], sizes = [2, 1, 32], strides = [1, 1, 1]} : vector<2x8x32xf32> to vector<2x1x32xf32>
    %42 = vector.shape_cast %41 : vector<2x1x32xf32> to vector<2x32xf32>
    %43 = arith.truncf %40 : vector<2x32xf32> to vector<2x32xbf16>
    %cst_14 = arith.constant dense<0.000000e+00> : vector<2x32xf32>
    %44 = tpu.matmul %43, %0, %cst_14 {dimension_numbers = #tpu.dot_dimension_numbers<[1], [0], [0], [1], [0, 0, 1, 1], [], []>} : vector<2x32xbf16>, vector<32x32xbf16>, vector<2x32xf32> -> vector<2x32xf32>
    %45 = arith.addf %42, %44 : vector<2x32xf32>
    %46 = math.tanh %45 : vector<2x32xf32>
    %47 = vector.extract_strided_slice %9 {offsets = [0, 6, 0], sizes = [2, 1, 32], strides = [1, 1, 1]} : vector<2x8x32xf32> to vector<2x1x32xf32>
    %48 = vector.shape_cast %47 : vector<2x1x32xf32> to vector<2x32xf32>
    %49 = arith.truncf %46 : vector<2x32xf32> to vector<2x32xbf16>
    %cst_15 = arith.constant dense<0.000000e+00> : vector<2x32xf32>
    %50 = tpu.matmul %49, %0, %cst_15 {dimension_numbers = #tpu.dot_dimension_numbers<[1], [0], [0], [1], [0, 0, 1, 1], [], []>} : vector<2x32xbf16>, vector<32x32xbf16>, vector<2x32xf32> -> vector<2x32xf32>
    %51 = arith.addf %48, %50 : vector<2x32xf32>
    %52 = math.tanh %51 : vector<2x32xf32>
    %53 = vector.extract_strided_slice %9 {offsets = [0, 7, 0], sizes = [2, 1, 32], strides = [1, 1, 1]} : vector<2x8x32xf32> to vector<2x1x32xf32>
    %54 = vector.shape_cast %53 : vector<2x1x32xf32> to vector<2x32xf32>
    %55 = arith.truncf %52 : vector<2x32xf32> to vector<2x32xbf16>
    %cst_16 = arith.constant dense<0.000000e+00> : vector<2x32xf32>
    %56 = tpu.matmul %55, %0, %cst_16 {dimension_numbers = #tpu.dot_dimension_numbers<[1], [0], [0], [1], [0, 0, 1, 1], [], []>} : vector<2x32xbf16>, vector<32x32xbf16>, vector<2x32xf32> -> vector<2x32xf32>
    %57 = arith.addf %54, %56 : vector<2x32xf32>
    %58 = math.tanh %57 : vector<2x32xf32>
    %59 = vector.shape_cast %16 : vector<2x32xf32> to vector<2x1x32xf32>
    %60 = vector.shape_cast %22 : vector<2x32xf32> to vector<2x1x32xf32>
    %61 = vector.shape_cast %28 : vector<2x32xf32> to vector<2x1x32xf32>
    %62 = vector.shape_cast %34 : vector<2x32xf32> to vector<2x1x32xf32>
    %63 = vector.shape_cast %40 : vector<2x32xf32> to vector<2x1x32xf32>
    %64 = vector.shape_cast %46 : vector<2x32xf32> to vector<2x1x32xf32>
    %65 = vector.shape_cast %52 : vector<2x32xf32> to vector<2x1x32xf32>
    %66 = vector.shape_cast %58 : vector<2x32xf32> to vector<2x1x32xf32>
    %67 = tpu.concatenate %59, %60, %61, %62, %63, %64, %65, %66 in 1 : vector<2x1x32xf32>, vector<2x1x32xf32>, vector<2x1x32xf32>, vector<2x1x32xf32>, vector<2x1x32xf32>, vector<2x1x32xf32>, vector<2x1x32xf32>, vector<2x1x32xf32> -> vector<2x8x32xf32>
    %68 = vector.shape_cast %67 : vector<2x8x32xf32> to vector<16x32xf32>
    %69 = vector.broadcast %3 : vector<1x32xf32> to vector<16x32xf32>
    %70 = arith.mulf %68, %69 : vector<16x32xf32>
    %cst_17 = arith.constant dense<0.000000e+00> : vector<16xf32>
    %71 = vector.multi_reduction <add>, %70, %cst_17 [1] : vector<16x32xf32> to vector<16xf32>
    %72 = vector.shape_cast %71 : vector<16xf32> to vector<16x1xf32>
    %73 = vector.broadcast %4 : vector<1x1xf32> to vector<16x1xf32>
    %74 = arith.addf %72, %73 : vector<16x1xf32>
    %c0_18 = arith.constant 0 : index
    %c0_19 = arith.constant 0 : index
    %75 = vector.load %arg3[%c0_18, %c0_19] : memref<16x1xf32, #tpu.memory_space<vmem>>, vector<16x1xf32>
    tpu.vector_store %arg3[%c0_18, %c0_19], %74 {strides = array<i32>} : memref<16x1xf32, #tpu.memory_space<vmem>>, vector<16x1xf32>,
    return
  }
}

</mosaic_0001>

<llo_original>
// kernel: tpu_custom_call.1
$region0: #{tpu_custom_call.1}
  #allocation0 [shape = 'u32[]', space=smem, size = 0x4, offset = 0x4, fixed_abs, tag = 'smem constant byte address 0x4 - core index']
  #allocation1 [shape = 'u32[144,128]{1,0:T(1,128)}', space=vmem, size = 0x12000, scoped, tag = 'internal scratch']
  %s0 = inlined_call_operand.vmem [shape: bf16[16,8], index: 0, kind: input, shape index: {}]
  %s1 = inlined_call_operand.vmem [shape: bf16[40,32], index: 1, kind: input, shape index: {}]
  %s2 = inlined_call_operand.vmem [shape: f32[3,32], index: 2, kind: input, shape index: {}]
  %s3 = inlined_call_operand.vmem [shape: f32[16,1], index: 3, kind: output, shape index: {}]
  %s4 = sld [smem:[#allocation0]]
  $region22: #{tpu_custom_call.1} parent=0
    _
  %s6 = ssub.s32 1, %s4
  %s7 = scalar_select 0, %s6, %s4
  // Predicated region
  $region2: #{tpu_custom_call.1} parent=0 // pred_check
    _
  $region3: #{tpu_custom_call.1} parent=0 // pred_check_branch
    %9 = sbr.rel (0) target = $region5
  $region4: #{tpu_custom_call.1} parent=0 // pred_region
    _
  $region5: #{tpu_custom_call.1} parent=0 // pred_fallthru
    _
  // Predicated region
  $region6: #{tpu_custom_call.1} parent=0 // pred_check
    _
  $region7: #{tpu_custom_call.1} parent=0 // pred_check_branch
    %11 = sbr.rel (0) target = $region9
  $region8: #{tpu_custom_call.1} parent=0 // pred_region
    _
  $region9: #{tpu_custom_call.1} parent=0 // pred_fallthru
    _
  // Predicated region
  $region10: #{tpu_custom_call.1} parent=0 // pred_check
    _
  $region11: #{tpu_custom_call.1} parent=0 // pred_check_branch
    %13 = sbr.rel (0) target = $region13
  $region12: #{tpu_custom_call.1} parent=0 // pred_region
    _
  $region13: #{tpu_custom_call.1} parent=0 // pred_fallthru
    _
  %v15 = vld [vmem:[%s1] sm:$0xf]
  %v16 = vld [vmem:[%s1 + $0x4] sm:$0xf]
  %v17 = vld [vmem:[%s1 + $0x8] sm:$0xf]
  %v18 = vld [vmem:[%s1 + $0xc] sm:$0xf]
  %v19 = vld [vmem:[%s1 + $0x10] sm:$0xf]
  %v20 = vld [vmem:[%s2] sm:$0x1]
  %v21 = vld [vmem:[%s2 + $0x1] sm:$0x1]
  %v22 = vld [vmem:[%s2 + $0x2] sm:$0x1]
  %v23 = vld [vmem:[%s0] sm:$0xf]
  %v24 = vld [vmem:[%s0 + $0x4] sm:$0xf]
  %v25 = vlaneseq
  %v26 = vshrl.u32 %v25, 7
  %v27 = vsub.s32 0, %v26
  %v28 = vrot.slane %v20, %v27
  %v31 = vunpack.c.l.b16 %v23
  %v32 = vunpack.c.l.b16 %v24
  %v33 = vpack.c.b16 %v32, %v31
  %vm34 = vcmask 64512
  %v36 = vsel %vm34, %v33, 0
  %vm38 = vcmask 1043456
  %v40 = vsel %vm38, %v19, 0
  %42 = vmatprep.subr.bf16.mxu0 0
  %43 = vmatpush1.bf16.msra.mxu0 0
  %44 = vmatprep.subr.bf16.mxu0 0
  %45 = vmatpush1.bf16.msra.mxu0 0
  %46 = vmatprep.subr.bf16.mxu0 0
  %47 = vmatpush1.bf16.msra.mxu0 0
  %48 = vmatprep.subr.bf16.mxu0 0
  %49 = vmatpush1.bf16.msra.mxu0 0
  %50 = vmatprep.subr.bf16.mxu0 0
  %51 = vmatpush1.bf16.msra.mxu0 0
  %52 = vmatprep.subr.bf16.mxu0 0
  %53 = vmatpush1.bf16.msra.mxu0 0
  %54 = vmatprep.subr.bf16.mxu0 0
  %55 = vmatpush1.bf16.msra.mxu0 0
  %56 = vmatprep.subr.bf16.mxu0 0
  %57 = vmatpush1.bf16.msra.mxu0 %v40
  %58 = vmatprep.subr.bf16.mxu0 0
  %59 = vmatpush2.bf16.msra.mxu0 0
  %60 = vmatprep.subr.bf16.mxu0 0
  %61 = vmatpush2.bf16.msra.mxu0 0
  %62 = vmatprep.subr.bf16.mxu0 0
  %63 = vmatpush2.bf16.msra.mxu0 0
  %64 = vmatprep.subr.bf16.mxu0 0
  %65 = vmatpush2.bf16.msra.mxu0 0
  %66 = vmatprep.subr.bf16.mxu0 0
  %67 = vmatpush2.bf16.msra.mxu0 0
  %68 = vmatprep.subr.bf16.mxu0 0
  %69 = vmatpush2.bf16.msra.mxu0 0
  %70 = vmatprep.subr.bf16.mxu0 0
  %71 = vmatpush2.bf16.msra.mxu0 0
  %72 = vmatprep.subr.bf16.mxu0 0
  %73 = vmatpush2.bf16.msra.mxu0 0
  %74 = vmatprep.mubr.bf16.mxu0 0
  %75 = vmatmul.mubr.bf16.gmra.mxu0 %v36
  %v76 = vpop.f32.mrf.mxu0
  %v77 = vadd.f32 %v28, %v76
  %v78 = vpop.f32.mrf.mxu0
  %v79 = vpop.f32.mrf.mxu0
  %v80 = vadd.f32 %v28, %v79
  %v81 = vpop.f32.mrf.mxu0
  %82 = vdwg.mxu0
  %v87 = vunpack.c.l.b16 %v15
  %v88 = vunpack.c.l.b16 %v16
  %v89 = vunpack.c.l.b16 %v17
  %v90 = vunpack.c.l.b16 %v18
  %v91 = vpack.c.b16 %v88, %v87
  %v92 = vpack.c.b16 %v90, %v89
  %vm95 = vcmask 261120
  %v97 = vsel %vm95, 0, 0
  %99 = vmatprep.subr.bf16.mxu0 0
  %100 = vmatpush1.bf16.msra.mxu0 0
  %101 = vmatprep.subr.bf16.mxu0 0
  %102 = vmatpush1.bf16.msra.mxu0 0
  %103 = vmatprep.subr.bf16.mxu0 0
  %104 = vmatpush1.bf16.msra.mxu0 0
  %105 = vmatprep.subr.bf16.mxu0 0
  %106 = vmatpush1.bf16.msra.mxu0 0
  %107 = vmatprep.subr.bf16.mxu0 0
  %108 = vmatpush1.bf16.msra.mxu0 0
  %109 = vmatprep.subr.bf16.mxu0 0
  %110 = vmatpush1.bf16.msra.mxu0 0
  %111 = vmatprep.subr.bf16.mxu0 0
  %112 = vmatpush1.bf16.msra.mxu0 %v92
  %113 = vmatprep.subr.bf16.mxu0 0
  %114 = vmatpush1.bf16.msra.mxu0 %v91
  %115 = vmatprep.subr.bf16.mxu0 0
  %116 = vmatpush2.bf16.msra.mxu0 0
  %117 = vmatprep.subr.bf16.mxu0 0
  %118 = vmatpush2.bf16.msra.mxu0 0
  %119 = vmatprep.subr.bf16.mxu0 0
  %120 = vmatpush2.bf16.msra.mxu0 0
  %121 = vmatprep.subr.bf16.mxu0 0
  %122 = vmatpush2.bf16.msra.mxu0 0
  %123 = vmatprep.subr.bf16.mxu0 0
  %124 = vmatpush2.bf16.msra.mxu0 0
  %125 = vmatprep.subr.bf16.mxu0 0
  %126 = vmatpush2.bf16.msra.mxu0 0
  %127 = vmatprep.subr.bf16.mxu0 0
  %128 = vmatpush2.bf16.msra.mxu0 0
  %129 = vmatprep.subr.bf16.mxu0 0
  %130 = vmatpush2.bf16.msra.mxu0 0
  %131 = vmatprep.mubr.bf16.mxu0 0
  %132 = vmatmul.mubr.bf16.gmra.mxu0 %v97
  %v133 = vpop.f32.mrf.mxu0
  %v134 = vadd.f32 0.0, %v133
  %v135 = vpop.f32.mrf.mxu0
  %v136 = vpop.f32.mrf.mxu0
  %v137 = vpop.f32.mrf.mxu0
  %138 = vdwg.mxu0
  %v140 = vrot.slane %v134, 1
  %v143 = vadd.f32 %v77, %v134
  %v144 = vadd.f32 %v80, %v140
  %v145 = vtanh.pop %v143
  %v146 = vtanh.pop %v144
  %v147 = vpack.c.bf16 %v145, %v145
  %v148 = vpack.c.bf16 %v146, %v146
  %v151 = vunpack.c.l.b16 %v147
  %v152 = vunpack.c.l.b16 %v148
  %v153 = vrot.slane %v152, 7
  %vm154 = vcmask 1041409
  %v155 = vsel %vm154, %v153, %v151
  %v156 = vpack.c.b16 %v155, %v155
  %v158 = vsel %vm95, %v156, 0
  %160 = vmatprep.subr.bf16.mxu0 0
  %161 = vmatpush1.bf16.msra.mxu0 0
  %162 = vmatprep.subr.bf16.mxu0 0
  %163 = vmatpush1.bf16.msra.mxu0 0
  %164 = vmatprep.subr.bf16.mxu0 0
  %165 = vmatpush1.bf16.msra.mxu0 0
  %166 = vmatprep.subr.bf16.mxu0 0
  %167 = vmatpush1.bf16.msra.mxu0 0
  %168 = vmatprep.subr.bf16.mxu0 0
  %169 = vmatpush1.bf16.msra.mxu0 0
  %170 = vmatprep.subr.bf16.mxu0 0
  %171 = vmatpush1.bf16.msra.mxu0 0
  %172 = vmatprep.subr.bf16.mxu0 0
  %173 = vmatpush1.bf16.msra.mxu0 %v92
  %174 = vmatprep.subr.bf16.mxu0 0
  %175 = vmatpush1.bf16.msra.mxu0 %v91
  %176 = vmatprep.subr.bf16.mxu0 0
  %177 = vmatpush2.bf16.msra.mxu0 0
  %178 = vmatprep.subr.bf16.mxu0 0
  %179 = vmatpush2.bf16.msra.mxu0 0
  %180 = vmatprep.subr.bf16.mxu0 0
  %181 = vmatpush2.bf16.msra.mxu0 0
  %182 = vmatprep.subr.bf16.mxu0 0
  %183 = vmatpush2.bf16.msra.mxu0 0
  %184 = vmatprep.subr.bf16.mxu0 0
  %185 = vmatpush2.bf16.msra.mxu0 0
  %186 = vmatprep.subr.bf16.mxu0 0
  %187 = vmatpush2.bf16.msra.mxu0 0
  %188 = vmatprep.subr.bf16.mxu0 0
  %189 = vmatpush2.bf16.msra.mxu0 0
  %190 = vmatprep.subr.bf16.mxu0 0
  %191 = vmatpush2.bf16.msra.mxu0 0
  %192 = vmatprep.mubr.bf16.mxu0 0
  %193 = vmatmul.mubr.bf16.gmra.mxu0 %v158
  %v194 = vpop.f32.mrf.mxu0
  %v195 = vadd.f32 0.0, %v194
  %v196 = vpop.f32.mrf.mxu0
  %v197 = vpop.f32.mrf.mxu0
  %v198 = vpop.f32.mrf.mxu0
  %199 = vdwg.mxu0
  %v201 = vrot.slane %v195, 7
  %v204 = vadd.f32 %v77, %v201
  %v205 = vadd.f32 %v80, %v195
  %v206 = vtanh.pop %v204
  %v207 = vtanh.pop %v205
  %v208 = vpack.c.bf16 %v206, %v206
  %v209 = vpack.c.bf16 %v207, %v207
  %v212 = vunpack.c.l.b16 %v208
  %v213 = vunpack.c.l.b16 %v209
  %v214 = vrot.slane %v212, 1
  %v215 = vsel %vm154, %v213, %v214
  %v216 = vpack.c.b16 %v215, %v215
  %v218 = vsel %vm95, %v216, 0
  %220 = vmatprep.subr.bf16.mxu0 0
  %221 = vmatpush1.bf16.msra.mxu0 0
  %222 = vmatprep.subr.bf16.mxu0 0
  %223 = vmatpush1.bf16.msra.mxu0 0
  %224 = vmatprep.subr.bf16.mxu0 0
  %225 = vmatpush1.bf16.msra.mxu0 0
  %226 = vmatprep.subr.bf16.mxu0 0
  %227 = vmatpush1.bf16.msra.mxu0 0
  %228 = vmatprep.subr.bf16.mxu0 0
  %229 = vmatpush1.bf16.msra.mxu0 0
  %230 = vmatprep.subr.bf16.mxu0 0
  %231 = vmatpush1.bf16.msra.mxu0 0
  %232 = vmatprep.subr.bf16.mxu0 0
  %233 = vmatpush1.bf16.msra.mxu0 %v92
  %234 = vmatprep.subr.bf16.mxu0 0
  %235 = vmatpush1.bf16.msra.mxu0 %v91
  %236 = vmatprep.subr.bf16.mxu0 0
  %237 = vmatpush2.bf16.msra.mxu0 0
  %238 = vmatprep.subr.bf16.mxu0 0
  %239 = vmatpush2.bf16.msra.mxu0 0
  %240 = vmatprep.subr.bf16.mxu0 0
  %241 = vmatpush2.bf16.msra.mxu0 0
  %242 = vmatprep.subr.bf16.mxu0 0
  %243 = vmatpush2.bf16.msra.mxu0 0
  %244 = vmatprep.subr.bf16.mxu0 0
  %245 = vmatpush2.bf16.msra.mxu0 0
  %246 = vmatprep.subr.bf16.mxu0 0
  %247 = vmatpush2.bf16.msra.mxu0 0
  %248 = vmatprep.subr.bf16.mxu0 0
  %249 = vmatpush2.bf16.msra.mxu0 0
  %250 = vmatprep.subr.bf16.mxu0 0
  %251 = vmatpush2.bf16.msra.mxu0 0
  %252 = vmatprep.mubr.bf16.mxu0 0
  %253 = vmatmul.mubr.bf16.gmra.mxu0 %v218
  %v254 = vpop.f32.mrf.mxu0
  %v255 = vadd.f32 0.0, %v254
  %v256 = vpop.f32.mrf.mxu0
  %v257 = vpop.f32.mrf.mxu0
  %v258 = vpop.f32.mrf.mxu0
  %259 = vdwg.mxu0
  %v261 = vrot.slane %v255, 6
  %v262 = vrot.slane %v255, 7
  %v265 = vadd.f32 %v77, %v261
  %v266 = vadd.f32 %v80, %v262
  %v267 = vtanh.pop %v265
  %v268 = vtanh.pop %v266
  %v269 = vpack.c.bf16 %v267, %v267
  %v270 = vpack.c.bf16 %v268, %v268
  %v273 = vunpack.c.l.b16 %v269
  %v274 = vunpack.c.l.b16 %v270
  %v275 = vrot.slane %v273, 2
  %v276 = vrot.slane %v274, 1
  %v277 = vsel %vm154, %v276, %v275
  %v278 = vpack.c.b16 %v277, %v277
  %v280 = vsel %vm95, %v278, 0
  %282 = vmatprep.subr.bf16.mxu0 0
  %283 = vmatpush1.bf16.msra.mxu0 0
  %284 = vmatprep.subr.bf16.mxu0 0
  %285 = vmatpush1.bf16.msra.mxu0 0
  %286 = vmatprep.subr.bf16.mxu0 0
  %287 = vmatpush1.bf16.msra.mxu0 0
  %288 = vmatprep.subr.bf16.mxu0 0
  %289 = vmatpush1.bf16.msra.mxu0 0
  %290 = vmatprep.subr.bf16.mxu0 0
  %291 = vmatpush1.bf16.msra.mxu0 0
  %292 = vmatprep.subr.bf16.mxu0 0
  %293 = vmatpush1.bf16.msra.mxu0 0
  %294 = vmatprep.subr.bf16.mxu0 0
  %295 = vmatpush1.bf16.msra.mxu0 %v92
  %296 = vmatprep.subr.bf16.mxu0 0
  %297 = vmatpush1.bf16.msra.mxu0 %v91
  %298 = vmatprep.subr.bf16.mxu0 0
  %299 = vmatpush2.bf16.msra.mxu0 0
  %300 = vmatprep.subr.bf16.mxu0 0
  %301 = vmatpush2.bf16.msra.mxu0 0
  %302 = vmatprep.subr.bf16.mxu0 0
  %303 = vmatpush2.bf16.msra.mxu0 0
  %304 = vmatprep.subr.bf16.mxu0 0
  %305 = vmatpush2.bf16.msra.mxu0 0
  %306 = vmatprep.subr.bf16.mxu0 0
  %307 = vmatpush2.bf16.msra.mxu0 0
  %308 = vmatprep.subr.bf16.mxu0 0
  %309 = vmatpush2.bf16.msra.mxu0 0
  %310 = vmatprep.subr.bf16.mxu0 0
  %311 = vmatpush2.bf16.msra.mxu0 0
  %312 = vmatprep.subr.bf16.mxu0 0
  %313 = vmatpush2.bf16.msra.mxu0 0
  %314 = vmatprep.mubr.bf16.mxu0 0
  %315 = vmatmul.mubr.bf16.gmra.mxu0 %v280
  %v316 = vpop.f32.mrf.mxu0
  %v317 = vadd.f32 0.0, %v316
  %v318 = vpop.f32.mrf.mxu0
  %v319 = vpop.f32.mrf.mxu0
  %v320 = vpop.f32.mrf.mxu0
  %321 = vdwg.mxu0
  %v323 = vrot.slane %v317, 5
  %v324 = vrot.slane %v317, 6
  %v327 = vadd.f32 %v77, %v323
  %v328 = vadd.f32 %v80, %v324
  %v329 = vtanh.pop %v327
  %v330 = vtanh.pop %v328
  %v331 = vpack.c.bf16 %v329, %v329
  %v332 = vpack.c.bf16 %v330, %v330
  %v335 = vunpack.c.l.b16 %v331
  %v336 = vunpack.c.l.b16 %v332
  %v337 = vrot.slane %v335, 3
  %v338 = vrot.slane %v336, 2
  %v339 = vsel %vm154, %v338, %v337
  %v340 = vpack.c.b16 %v339, %v339
  %v342 = vsel %vm95, %v340, 0
  %344 = vmatprep.subr.bf16.mxu0 0
  %345 = vmatpush1.bf16.msra.mxu0 0
  %346 = vmatprep.subr.bf16.mxu0 0
  %347 = vmatpush1.bf16.msra.mxu0 0
  %348 = vmatprep.subr.bf16.mxu0 0
  %349 = vmatpush1.bf16.msra.mxu0 0
  %350 = vmatprep.subr.bf16.mxu0 0
  %351 = vmatpush1.bf16.msra.mxu0 0
  %352 = vmatprep.subr.bf16.mxu0 0
  %353 = vmatpush1.bf16.msra.mxu0 0
  %354 = vmatprep.subr.bf16.mxu0 0
  %355 = vmatpush1.bf16.msra.mxu0 0
  %356 = vmatprep.subr.bf16.mxu0 0
  %357 = vmatpush1.bf16.msra.mxu0 %v92
  %358 = vmatprep.subr.bf16.mxu0 0
  %359 = vmatpush1.bf16.msra.mxu0 %v91
  %360 = vmatprep.subr.bf16.mxu0 0
  %361 = vmatpush2.bf16.msra.mxu0 0
  %362 = vmatprep.subr.bf16.mxu0 0
  %363 = vmatpush2.bf16.msra.mxu0 0
  %364 = vmatprep.subr.bf16.mxu0 0
  %365 = vmatpush2.bf16.msra.mxu0 0
  %366 = vmatprep.subr.bf16.mxu0 0
  %367 = vmatpush2.bf16.msra.mxu0 0
  %368 = vmatprep.subr.bf16.mxu0 0
  %369 = vmatpush2.bf16.msra.mxu0 0
  %370 = vmatprep.subr.bf16.mxu0 0
  %371 = vmatpush2.bf16.msra.mxu0 0
  %372 = vmatprep.subr.bf16.mxu0 0
  %373 = vmatpush2.bf16.msra.mxu0 0
  %374 = vmatprep.subr.bf16.mxu0 0
  %375 = vmatpush2.bf16.msra.mxu0 0
  %376 = vmatprep.mubr.bf16.mxu0 0
  %377 = vmatmul.mubr.bf16.gmra.mxu0 %v342
  %v378 = vpop.f32.mrf.mxu0
  %v379 = vadd.f32 0.0, %v378
  %v380 = vpop.f32.mrf.mxu0
  %v381 = vpop.f32.mrf.mxu0
  %v382 = vpop.f32.mrf.mxu0
  %383 = vdwg.mxu0
  %v385 = vrot.slane %v379, 4
  %v386 = vrot.slane %v379, 5
  %v389 = vadd.f32 %v77, %v385
  %v390 = vadd.f32 %v80, %v386
  %v391 = vtanh.pop %v389
  %v392 = vtanh.pop %v390
  %v393 = vpack.c.bf16 %v391, %v391
  %v394 = vpack.c.bf16 %v392, %v392
  %v397 = vunpack.c.l.b16 %v393
  %v398 = vunpack.c.l.b16 %v394
  %v399 = vrot.slane %v397, 4
  %v400 = vrot.slane %v398, 3
  %v401 = vsel %vm154, %v400, %v399
  %v402 = vpack.c.b16 %v401, %v401
  %v404 = vsel %vm95, %v402, 0
  %406 = vmatprep.subr.bf16.mxu0 0
  %407 = vmatpush1.bf16.msra.mxu0 0
  %408 = vmatprep.subr.bf16.mxu0 0
  %409 = vmatpush1.bf16.msra.mxu0 0
  %410 = vmatprep.subr.bf16.mxu0 0
  %411 = vmatpush1.bf16.msra.mxu0 0
  %412 = vmatprep.subr.bf16.mxu0 0
  %413 = vmatpush1.bf16.msra.mxu0 0
  %414 = vmatprep.subr.bf16.mxu0 0
  %415 = vmatpush1.bf16.msra.mxu0 0
  %416 = vmatprep.subr.bf16.mxu0 0
  %417 = vmatpush1.bf16.msra.mxu0 0
  %418 = vmatprep.subr.bf16.mxu0 0
  %419 = vmatpush1.bf16.msra.mxu0 %v92
  %420 = vmatprep.subr.bf16.mxu0 0
  %421 = vmatpush1.bf16.msra.mxu0 %v91
  %422 = vmatprep.subr.bf16.mxu0 0
  %423 = vmatpush2.bf16.msra.mxu0 0
  %424 = vmatprep.subr.bf16.mxu0 0
  %425 = vmatpush2.bf16.msra.mxu0 0
  %426 = vmatprep.subr.bf16.mxu0 0
  %427 = vmatpush2.bf16.msra.mxu0 0
  %428 = vmatprep.subr.bf16.mxu0 0
  %429 = vmatpush2.bf16.msra.mxu0 0
  %430 = vmatprep.subr.bf16.mxu0 0
  %431 = vmatpush2.bf16.msra.mxu0 0
  %432 = vmatprep.subr.bf16.mxu0 0
  %433 = vmatpush2.bf16.msra.mxu0 0
  %434 = vmatprep.subr.bf16.mxu0 0
  %435 = vmatpush2.bf16.msra.mxu0 0
  %436 = vmatprep.subr.bf16.mxu0 0
  %437 = vmatpush2.bf16.msra.mxu0 0
  %438 = vmatprep.mubr.bf16.mxu0 0
  %439 = vmatmul.mubr.bf16.gmra.mxu0 %v404
  %v440 = vpop.f32.mrf.mxu0
  %v441 = vadd.f32 0.0, %v440
  %v442 = vpop.f32.mrf.mxu0
  %v443 = vpop.f32.mrf.mxu0
  %v444 = vpop.f32.mrf.mxu0
  %445 = vdwg.mxu0
  %v447 = vrot.slane %v441, 3
  %v448 = vrot.slane %v441, 4
  %v451 = vadd.f32 %v77, %v447
  %v452 = vadd.f32 %v80, %v448
  %v453 = vtanh.pop %v451
  %v454 = vtanh.pop %v452
  %v455 = vpack.c.bf16 %v453, %v453
  %v456 = vpack.c.bf16 %v454, %v454
  %v459 = vunpack.c.l.b16 %v455
  %v460 = vunpack.c.l.b16 %v456
  %v461 = vrot.slane %v459, 5
  %v462 = vrot.slane %v460, 4
  %v463 = vsel %vm154, %v462, %v461
  %v464 = vpack.c.b16 %v463, %v463
  %v466 = vsel %vm95, %v464, 0
  %468 = vmatprep.subr.bf16.mxu0 0
  %469 = vmatpush1.bf16.msra.mxu0 0
  %470 = vmatprep.subr.bf16.mxu0 0
  %471 = vmatpush1.bf16.msra.mxu0 0
  %472 = vmatprep.subr.bf16.mxu0 0
  %473 = vmatpush1.bf16.msra.mxu0 0
  %474 = vmatprep.subr.bf16.mxu0 0
  %475 = vmatpush1.bf16.msra.mxu0 0
  %476 = vmatprep.subr.bf16.mxu0 0
  %477 = vmatpush1.bf16.msra.mxu0 0
  %478 = vmatprep.subr.bf16.mxu0 0
  %479 = vmatpush1.bf16.msra.mxu0 0
  %480 = vmatprep.subr.bf16.mxu0 0
  %481 = vmatpush1.bf16.msra.mxu0 %v92
  %482 = vmatprep.subr.bf16.mxu0 0
  %483 = vmatpush1.bf16.msra.mxu0 %v91
  %484 = vmatprep.subr.bf16.mxu0 0
  %485 = vmatpush2.bf16.msra.mxu0 0
  %486 = vmatprep.subr.bf16.mxu0 0
  %487 = vmatpush2.bf16.msra.mxu0 0
  %488 = vmatprep.subr.bf16.mxu0 0
  %489 = vmatpush2.bf16.msra.mxu0 0
  %490 = vmatprep.subr.bf16.mxu0 0
  %491 = vmatpush2.bf16.msra.mxu0 0
  %492 = vmatprep.subr.bf16.mxu0 0
  %493 = vmatpush2.bf16.msra.mxu0 0
  %494 = vmatprep.subr.bf16.mxu0 0
  %495 = vmatpush2.bf16.msra.mxu0 0
  %496 = vmatprep.subr.bf16.mxu0 0
  %497 = vmatpush2.bf16.msra.mxu0 0
  %498 = vmatprep.subr.bf16.mxu0 0
  %499 = vmatpush2.bf16.msra.mxu0 0
  %500 = vmatprep.mubr.bf16.mxu0 0
  %501 = vmatmul.mubr.bf16.gmra.mxu0 %v466
  %v502 = vpop.f32.mrf.mxu0
  %v503 = vadd.f32 0.0, %v502
  %v504 = vpop.f32.mrf.mxu0
  %v505 = vpop.f32.mrf.mxu0
  %v506 = vpop.f32.mrf.mxu0
  %507 = vdwg.mxu0
  %v509 = vrot.slane %v503, 2
  %v510 = vrot.slane %v503, 3
  %v513 = vadd.f32 %v77, %v509
  %v514 = vadd.f32 %v80, %v510
  %v515 = vtanh.pop %v513
  %v516 = vtanh.pop %v514
  %v517 = vpack.c.bf16 %v515, %v515
  %v518 = vpack.c.bf16 %v516, %v516
  %v521 = vunpack.c.l.b16 %v517
  %v522 = vunpack.c.l.b16 %v518
  %v523 = vrot.slane %v521, 6
  %v524 = vrot.slane %v522, 5
  %v525 = vsel %vm154, %v524, %v523
  %v526 = vpack.c.b16 %v525, %v525
  %v528 = vsel %vm95, %v526, 0
  %530 = vmatprep.subr.bf16.mxu0 0
  %531 = vmatpush1.bf16.msra.mxu0 0
  %532 = vmatprep.subr.bf16.mxu0 0
  %533 = vmatpush1.bf16.msra.mxu0 0
  %534 = vmatprep.subr.bf16.mxu0 0
  %535 = vmatpush1.bf16.msra.mxu0 0
  %536 = vmatprep.subr.bf16.mxu0 0
  %537 = vmatpush1.bf16.msra.mxu0 0
  %538 = vmatprep.subr.bf16.mxu0 0
  %539 = vmatpush1.bf16.msra.mxu0 0
  %540 = vmatprep.subr.bf16.mxu0 0
  %541 = vmatpush1.bf16.msra.mxu0 0
  %542 = vmatprep.subr.bf16.mxu0 0
  %543 = vmatpush1.bf16.msra.mxu0 %v92
  %544 = vmatprep.subr.bf16.mxu0 0
  %545 = vmatpush1.bf16.msra.mxu0 %v91
  %546 = vmatprep.subr.bf16.mxu0 0
  %547 = vmatpush2.bf16.msra.mxu0 0
  %548 = vmatprep.subr.bf16.mxu0 0
  %549 = vmatpush2.bf16.msra.mxu0 0
  %550 = vmatprep.subr.bf16.mxu0 0
  %551 = vmatpush2.bf16.msra.mxu0 0
  %552 = vmatprep.subr.bf16.mxu0 0
  %553 = vmatpush2.bf16.msra.mxu0 0
  %554 = vmatprep.subr.bf16.mxu0 0
  %555 = vmatpush2.bf16.msra.mxu0 0
  %556 = vmatprep.subr.bf16.mxu0 0
  %557 = vmatpush2.bf16.msra.mxu0 0
  %558 = vmatprep.subr.bf16.mxu0 0
  %559 = vmatpush2.bf16.msra.mxu0 0
  %560 = vmatprep.subr.bf16.mxu0 0
  %561 = vmatpush2.bf16.msra.mxu0 0
  %562 = vmatprep.mubr.bf16.mxu0 0
  %563 = vmatmul.mubr.bf16.gmra.mxu0 %v528
  %v564 = vpop.f32.mrf.mxu0
  %v565 = vadd.f32 0.0, %v564
  %v566 = vpop.f32.mrf.mxu0
  %v567 = vpop.f32.mrf.mxu0
  %v568 = vpop.f32.mrf.mxu0
  %569 = vdwg.mxu0
  %v571 = vrot.slane %v565, 1
  %v572 = vrot.slane %v565, 2
  %v575 = vadd.f32 %v77, %v571
  %v576 = vadd.f32 %v80, %v572
  %v577 = vtanh.pop %v575
  %v578 = vtanh.pop %v576
  %vm579 = vcmask 1040384
  %v580 = vsel %vm579, %v145, %v206
  %v581 = vsel %vm579, %v146, %v207
  %vm582 = vcmask 1041408
  %v583 = vsel %vm582, %v580, %v267
  %v584 = vsel %vm582, %v581, %v268
  %vm585 = vcmask 1042432
  %v586 = vsel %vm585, %v583, %v329
  %v587 = vsel %vm585, %v584, %v330
  %v588 = vsel %vm38, %v586, %v391
  %v589 = vsel %vm38, %v587, %v392
  %vm590 = vcmask 1044480
  %v591 = vsel %vm590, %v588, %v453
  %v592 = vsel %vm590, %v589, %v454
  %vm593 = vcmask 1045504
  %v594 = vsel %vm593, %v591, %v515
  %v595 = vsel %vm593, %v592, %v516
  %vm596 = vcmask 1046528
  %v597 = vsel %vm596, %v594, %v577
  %v598 = vsel %vm596, %v595, %v578
  %v599 = vlaneseq
  %v600 = vshrl.u32 %v599, 7
  %v601 = vsub.s32 0, %v600
  %v602 = vrot.slane %v21, %v601
  %v603 = vmul.f32 %v597, %v602
  %v604 = vmul.f32 %v598, %v602
  %v605 = vsel %vm95, %v603, 0.0
  %606 = vadd.xlane.f32.xlu0 %v605
  %v607 = vpop.xlane.xlu0 %606
  %v608 = vsel %vm95, %v604, 0.0
  %609 = vadd.xlane.f32.xlu0 %v608
  %v610 = vpop.xlane.xlu0 %609
  %v611 = vlaneseq
  %v612 = vshrl.u32 %v611, 7
  %v613 = vsub.s32 0, %v612
  %v614 = vrot.slane %v22, %v613
  %v615 = vadd.f32 %v607, %v614
  %v616 = vadd.f32 %v610, %v614
  %vm617 = vcmask 7168
  %618 = vst.msk [vmem:[%s3] sm:$0xff] %vm617, %v615
  %619 = vst.msk [vmem:[%s3 + $0x8] sm:$0xff] %vm617, %v616
  // Predicated region
  $region14: #{tpu_custom_call.1} parent=0 // pred_check
    _
  $region15: #{tpu_custom_call.1} parent=0 // pred_check_branch
    %621 = sbr.rel (0) target = $region17
  $region16: #{tpu_custom_call.1} parent=0 // pred_region
    _
  $region17: #{tpu_custom_call.1} parent=0 // pred_fallthru
    _
  // Predicated region
  $region18: #{tpu_custom_call.1} parent=0 // pred_check
    _
  $region19: #{tpu_custom_call.1} parent=0 // pred_check_branch
    %623 = sbr.rel (0) target = $region21
  $region20: #{tpu_custom_call.1} parent=0 // pred_region
    _
  $region21: #{tpu_custom_call.1} parent=0 // pred_fallthru
    _

</llo_original>
